<compile_context>
chip_gen: v5e
topology: v5e:2x2
jax: 0.10.0
libtpu: 0.0.40
codegen_flags: <defaults>
</compile_context>

<pallas_src>
import math
import functools
import jax
import jax.numpy as jnp
from jax.experimental import pallas as pl
from jax.experimental.pallas import tpu as pltpu


def _pick_tile_n(N, D, M, max_tile=512):
    """N-tile that is the full N or a multiple-of-8 divisor of N, sized so the
    double-buffered x/out tiles plus the f32 (TN, M) softmax temporaries stay well
    under the smallest per-chip scoped-VMEM default (16 MiB on v5e)."""
    per_row_bytes = (4 * D + 3 * M) * 4          # 2x(x) + 2x(out) f32 + ~3 (TN, M) f32 temps
    budget = 12 << 20
    cap = min(max_tile, max(8, (budget // per_row_bytes) // 8 * 8))
    if N <= cap:
        return N                                  # block dim == full array dim: always legal
    tn = cap
    while tn >= 8 and N % tn:
        tn -= 8
    return tn if tn >= 8 else N                   # fallback: single tile per batch


def attention_memory_bank(x, mem, *, compute_dtype=jnp.bfloat16, max_tile_n=512):
    """x: (B, N, D) f32, mem: (1, D, M) f32  ->  (B, N, D) f32."""
    B, N, D = x.shape
    _, D2, M = mem.shape
    assert D2 == D
    scale = 1.0 / math.sqrt(D)                    # PyTorch divides by sqrt(feature dim D)

    TN = _pick_tile_n(N, D, M, max_tile_n)
    n_tiles = N // TN

    m0 = mem[0]                                   # (D, M); tiny -> wrapper-side prep is negligible
    mem_scaled = (m0 * scale).astype(compute_dtype)   # logits operand, scale pre-folded
    mem_t = m0.T.astype(compute_dtype)                # (M, D) output-matmul operand

    def kernel(x_ref, ms_ref, mt_ref, o_ref):
        xb = x_ref[0].astype(compute_dtype)            # (TN, D)
        # logits over memory slots; f32 accumulation on the MXU
        logits = jnp.dot(xb, ms_ref[...], preferred_element_type=jnp.float32)   # (TN, M)
        # softmax over slots (last axis); max/exp/sum kept in f32
        logits = logits - jnp.max(logits, axis=-1, keepdims=True)
        e = jnp.exp(logits)
        denom = jnp.sum(e, axis=-1, keepdims=True)                               # (TN, 1)
        # deferred normalization: matmul the unnormalized weights, then scale by 1/denom
        out_un = jnp.dot(e.astype(compute_dtype), mt_ref[...],
                         preferred_element_type=jnp.float32)                     # (TN, D)
        o_ref[0] = (out_un * pl.reciprocal(denom, approx=True)).astype(o_ref.dtype)

    return pl.pallas_call(
        kernel,
        out_shape=jax.ShapeDtypeStruct((B, N, D), x.dtype),
        grid=(B, n_tiles),
        in_specs=[
            pl.BlockSpec((1, TN, D), lambda b, n: (b, n, 0)),
            # constant block index -> DMA'd once, stays VMEM-resident across the grid
            pl.BlockSpec((D, M), lambda b, n: (0, 0)),
            pl.BlockSpec((M, D), lambda b, n: (0, 0)),
        ],
        out_specs=pl.BlockSpec((1, TN, D), lambda b, n: (b, n, 0)),
        compiler_params=pltpu.CompilerParams(
            dimension_semantics=("parallel", "parallel")),
    )(x, mem_scaled, mem_t)


def attention_memory_bank_ref(x, mem):
    """Pure-JAX reference (mirrors the PyTorch forward)."""
    B, N, D = x.shape
    m = mem[0]                                                     # (D, M)
    logits = jnp.einsum("bnd,dm->bnm", x, m) / math.sqrt(D)
    attn = jax.nn.softmax(logits, axis=-1)                         # softmax over slots
    return jnp.einsum("bnm,dm->bnd", attn, m)


if __name__ == "__main__":
    B, N, D, MEM_SIZE = 2, 64, 32, 64
    key = jax.random.PRNGKey(0)
    kx, km = jax.random.split(key)
    x = jax.random.normal(kx, (B, N, D), jnp.float32)
    mem = jax.random.normal(km, (1, D, MEM_SIZE), jnp.float32)     # nn.Parameter ~ N(0, 1)

    ref = attention_memory_bank_ref(x, mem)

    # default perf path: bf16 MXU operands, f32 softmax / accumulation
    fwd = jax.jit(attention_memory_bank)
    out = jax.block_until_ready(fwd(x, mem))
    assert out.shape == (B, N, D)
    assert bool(jnp.all(jnp.isfinite(out)))
    assert bool(jnp.allclose(out, ref, rtol=2e-2, atol=2e-2)), \
        float(jnp.max(jnp.abs(out - ref)))

    # full-f32 path: tight check against the reference
    fwd32 = jax.jit(functools.partial(attention_memory_bank, compute_dtype=jnp.float32))
    out32 = jax.block_until_ready(fwd32(x, mem))
    assert bool(jnp.allclose(out32, ref, rtol=1e-2, atol=1e-2)), \
        float(jnp.max(jnp.abs(out32 - ref)))

    print("KERNEL_OK")
</pallas_src>

<mosaic_0001>
module attributes {stable_mosaic.version = 11 : i64} {
  func.func @kernel(%arg0: i32, %arg1: i32, %arg2: memref<1x64x32xf32, #tpu.memory_space<vmem>>, %arg3: memref<32x64xbf16, #tpu.memory_space<vmem>>, %arg4: memref<64x32xbf16, #tpu.memory_space<vmem>>, %arg5: memref<1x64x32xf32, #tpu.memory_space<vmem>>) attributes {dimension_semantics = [#tpu.dimension_semantics<parallel>, #tpu.dimension_semantics<parallel>], iteration_bounds = array<i64: 2, 1>, scalar_prefetch = 0 : i64, scratch_operands = 0 : i64, tpu.core_type = #tpu.core_type<tc>, window_params = [{transform_indices = @transform_0, window_bounds = array<i64: 1, 64, 32>}, {pipeline_mode = #tpu.pipeline_mode<synchronous>, transform_indices = @transform_1, window_bounds = array<i64: 32, 64>}, {pipeline_mode = #tpu.pipeline_mode<synchronous>, transform_indices = @transform_2, window_bounds = array<i64: 64, 32>}, {transform_indices = @transform_3, window_bounds = array<i64: 1, 64, 32>}]} {
    %c0 = arith.constant 0 : index
    %c0_0 = arith.constant 0 : index
    %c0_1 = arith.constant 0 : index
    %0 = vector.load %arg2[%c0, %c0_0, %c0_1] : memref<1x64x32xf32, #tpu.memory_space<vmem>>, vector<1x64x32xf32>
    %1 = vector.shape_cast %0 : vector<1x64x32xf32> to vector<64x32xf32>
    %2 = arith.truncf %1 : vector<64x32xf32> to vector<64x32xbf16>
    %c0_2 = arith.constant 0 : index
    %c0_3 = arith.constant 0 : index
    %3 = vector.load %arg3[%c0_2, %c0_3] : memref<32x64xbf16, #tpu.memory_space<vmem>>, vector<32x64xbf16>
    %cst = arith.constant dense<0.000000e+00> : vector<64x64xf32>
    %4 = tpu.matmul %2, %3, %cst {dimension_numbers = #tpu.dot_dimension_numbers<[1], [0], [0], [1], [0, 0, 1, 1], [], []>} : vector<64x32xbf16>, vector<32x64xbf16>, vector<64x64xf32> -> vector<64x64xf32>
    %cst_4 = arith.constant dense<0xFF800000> : vector<64xf32>
    %5 = vector.multi_reduction <maximumf>, %4, %cst_4 [1] : vector<64x64xf32> to vector<64xf32>
    %6 = vector.shape_cast %5 : vector<64xf32> to vector<64x1xf32>
    %7 = vector.broadcast %6 : vector<64x1xf32> to vector<64x64xf32>
    %8 = arith.subf %4, %7 : vector<64x64xf32>
    %9 = math.exp %8 : vector<64x64xf32>
    %cst_5 = arith.constant dense<0.000000e+00> : vector<64xf32>
    %10 = vector.multi_reduction <add>, %9, %cst_5 [1] : vector<64x64xf32> to vector<64xf32>
    %11 = vector.shape_cast %10 : vector<64xf32> to vector<64x1xf32>
    %12 = arith.truncf %9 : vector<64x64xf32> to vector<64x64xbf16>
    %c0_6 = arith.constant 0 : index
    %c0_7 = arith.constant 0 : index
    %13 = vector.load %arg4[%c0_6, %c0_7] : memref<64x32xbf16, #tpu.memory_space<vmem>>, vector<64x32xbf16>
    %cst_8 = arith.constant dense<0.000000e+00> : vector<64x32xf32>
    %14 = tpu.matmul %12, %13, %cst_8 {dimension_numbers = #tpu.dot_dimension_numbers<[1], [0], [0], [1], [0, 0, 1, 1], [], []>} : vector<64x64xbf16>, vector<64x32xbf16>, vector<64x32xf32> -> vector<64x32xf32>
    %15 = tpu.reciprocal %11 {approx = true} : vector<64x1xf32> -> vector<64x1xf32>
    %16 = vector.broadcast %15 : vector<64x1xf32> to vector<64x32xf32>
    %17 = arith.mulf %14, %16 : vector<64x32xf32>
    %c0_9 = arith.constant 0 : index
    %c0_10 = arith.constant 0 : index
    %c0_11 = arith.constant 0 : index
    %18 = vector.load %arg5[%c0_9, %c0_10, %c0_11] : memref<1x64x32xf32, #tpu.memory_space<vmem>>, vector<1x64x32xf32>
    %19 = vector.shape_cast %18 : vector<1x64x32xf32> to vector<64x32xf32>
    %20 = vector.shape_cast %17 : vector<64x32xf32> to vector<1x64x32xf32>
    tpu.vector_store %arg5[%c0_9, %c0_10, %c0_11], %20 {strides = array<i32>} : memref<1x64x32xf32, #tpu.memory_space<vmem>>, vector<1x64x32xf32>,
    return
  }
  func.func @transform_0(%arg0: i32, %arg1: i32) -> (i32, i32, i32) {
    %c0_i32 = arith.constant 0 : i32
    %c0_i32_0 = arith.constant 0 : i32
    return %arg0, %arg1, %c0_i32 : i32, i32, i32
  }
  func.func @transform_1(%arg0: i32, %arg1: i32) -> (i32, i32) {
    %c0_i32 = arith.constant 0 : i32
    %c0_i32_0 = arith.constant 0 : i32
    %c0_i32_1 = arith.constant 0 : i32
    return %c0_i32, %c0_i32_0 : i32, i32
  }
  func.func @transform_2(%arg0: i32, %arg1: i32) -> (i32, i32) {
    %c0_i32 = arith.constant 0 : i32
    %c0_i32_0 = arith.constant 0 : i32
    %c0_i32_1 = arith.constant 0 : i32
    return %c0_i32, %c0_i32_0 : i32, i32
  }
  func.func @transform_3(%arg0: i32, %arg1: i32) -> (i32, i32, i32) {
    %c0_i32 = arith.constant 0 : i32
    %c0_i32_0 = arith.constant 0 : i32
    return %arg0, %arg1, %c0_i32 : i32, i32, i32
  }
}

</mosaic_0001>

<llo_original>
// kernel: attention_memory_bank.1
$region0: #{attention_memory_bank.1}
  #allocation0 [shape = 'u32[]', space=smem, size = 0x4, offset = 0x4, fixed_abs, tag = 'smem constant byte address 0x4 - core index']
  #allocation1 [shape = 'u32[72,128]{1,0:T(1,128)}', space=vmem, size = 0x9000, scoped, tag = 'internal scratch']
  %s0 = inlined_call_operand.vmem [shape: f32[2,64,32], index: 0, kind: input, shape index: {}]
  %s1 = inlined_call_operand.vmem [shape: bf16[32,64], index: 1, kind: input, shape index: {}]
  %s2 = inlined_call_operand.vmem [shape: bf16[64,32], index: 2, kind: input, shape index: {}]
  %s3 = inlined_call_operand.vmem [shape: f32[2,64,32], index: 3, kind: output, shape index: {}]
  %s4 = sld [smem:[#allocation0]]
  $region45: #{attention_memory_bank.1} parent=0
    _
  %s6 = ssub.s32 1, %s4
  %s7 = scalar_select 0, %s6, %s4
  loop: start=0, step=1, limit=4
  $region2: #{attention_memory_bank.1} parent=0 // loop_pre_header
    _
  $region3: #{attention_memory_bank.1} parent=0 // loop_header
    %s9 = sphi 0, %s13
    %p10 = scmp.ge.s32.totalorder %s9, 4
    %s16 = sphi 0, %s28
    %s17 = sphi 0, %s24
    %s18 = sphi 0, %s16
    %s19 = sphi 0, %s17
    %s20 = sphi 0, %s18
    %s21 = sphi 0, %s19
    %s33 = sphi 0, %s35
    %s36 = sphi 0, %s33
    %s37 = sphi 0, %s36
    %s53 = sphi 0, %s37
    %s57 = sphi 0, %s57
    %s59 = sphi 0, %s57
    %s60 = sphi 0, %s59
    %s74 = sphi 0, %s60
    %s78 = sphi 0, %s78
    %s80 = sphi 0, %s78
    %s81 = sphi 0, %s80
    %s95 = sphi 0, %s81
    %s103 = sphi 0, %s105
    %s106 = sphi 0, %s103
    %s107 = sphi 0, %s106
    %s123 = sphi 0, %s107
  $region4: #{attention_memory_bank.1} parent=0 // loop_header_branch
    %12 = sbr.rel (%p10) target = $region8
  $region5: #{attention_memory_bank.1} parent=0 // loop_body
    %s14 = ssub.s32 %s9, 1
    %s15 = ssub.s32 %s9, 2
    %s22 = sadd.s32 1, %s17
    %p23 = scmp.ge.s32.totalorder %s22, 1
    %s24 = scalar_select %p23, 0, %s22
    %s25 = sadd.s32 1, %s16
    %s26 = scalar_select %p23, %s25, %s16
    %p27 = scmp.ge.s32.totalorder %s26, 2
    %s28 = scalar_select %p27, 0, %s26
    %s29 = ssub.s32 %s16, %s28
    %s30 = ssub.s32 %s17, %s24
    %s31 = sor.u32 %s29, %s30
    %p32 = scmp.eq.s32.totalorder %s31, 0
    %s34 = sadd.s32 %s33, 1
    %s35 = scalar_select %p32, %s33, %s34
    %p38 = pneg %p32
    %p39 = scmp.eq.s32.totalorder %s9, 1
    %p40 = por %p38, %p39
    %p41 = scmp.ne.s32.totalorder %s33, %s36
    %p42 = scmp.eq.s32.totalorder %s9, 0
    %p43 = por %p41, %p42
    %p44 = scmp.ne.s32.totalorder %s33, %s36
    %p45 = scmp.eq.s32.totalorder %s14, 1
    %p46 = por %p44, %p45
    %p47 = scmp.ne.s32.totalorder %s36, %s37
    %p48 = scmp.eq.s32.totalorder %s14, 0
    %p49 = por %p47, %p48
    %p50 = scmp.ne.s32.totalorder %s36, %s37
    %p51 = scmp.eq.s32.totalorder %s15, 1
    %p52 = por %p50, %p51
    %p54 = scmp.ne.s32.totalorder %s37, %s53
    %p55 = scmp.eq.s32.totalorder %s15, 0
    %p56 = por %p54, %p55
    %s58 = sadd.s32 %s57, 1
    %p61 = scmp.eq.s32.totalorder %s9, 1
    %p62 = scmp.ne.s32.totalorder %s57, %s59
    %p63 = scmp.eq.s32.totalorder %s9, 0
    %p64 = por %p62, %p63
    %p65 = scmp.ne.s32.totalorder %s57, %s59
    %p66 = scmp.eq.s32.totalorder %s14, 1
    %p67 = por %p65, %p66
    %p68 = scmp.ne.s32.totalorder %s59, %s60
    %p69 = scmp.eq.s32.totalorder %s14, 0
    %p70 = por %p68, %p69
    %p71 = scmp.ne.s32.totalorder %s59, %s60
    %p72 = scmp.eq.s32.totalorder %s15, 1
    %p73 = por %p71, %p72
    %p75 = scmp.ne.s32.totalorder %s60, %s74
    %p76 = scmp.eq.s32.totalorder %s15, 0
    %p77 = por %p75, %p76
    %s79 = sadd.s32 %s78, 1
    %p82 = scmp.eq.s32.totalorder %s9, 1
    %p83 = scmp.ne.s32.totalorder %s78, %s80
    %p84 = scmp.eq.s32.totalorder %s9, 0
    %p85 = por %p83, %p84
    %p86 = scmp.ne.s32.totalorder %s78, %s80
    %p87 = scmp.eq.s32.totalorder %s14, 1
    %p88 = por %p86, %p87
    %p89 = scmp.ne.s32.totalorder %s80, %s81
    %p90 = scmp.eq.s32.totalorder %s14, 0
    %p91 = por %p89, %p90
    %p92 = scmp.ne.s32.totalorder %s80, %s81
    %p93 = scmp.eq.s32.totalorder %s15, 1
    %p94 = por %p92, %p93
    %p96 = scmp.ne.s32.totalorder %s81, %s95
    %p97 = scmp.eq.s32.totalorder %s15, 0
    %p98 = por %p96, %p97
    %s99 = ssub.s32 %s16, %s28
    %s100 = ssub.s32 %s17, %s24
    %s101 = sor.u32 %s99, %s100
    %p102 = scmp.eq.s32.totalorder %s101, 0
    %s104 = sadd.s32 %s103, 1
    %s105 = scalar_select %p102, %s103, %s104
    %p108 = pneg %p102
    %p109 = scmp.eq.s32.totalorder %s9, 1
    %p110 = por %p108, %p109
    %p111 = scmp.ne.s32.totalorder %s103, %s106
    %p112 = scmp.eq.s32.totalorder %s9, 0
    %p113 = por %p111, %p112
    %p114 = scmp.ne.s32.totalorder %s103, %s106
    %p115 = scmp.eq.s32.totalorder %s14, 1
    %p116 = por %p114, %p115
    %p117 = scmp.ne.s32.totalorder %s106, %s107
    %p118 = scmp.eq.s32.totalorder %s14, 0
    %p119 = por %p117, %p118
    %p120 = scmp.ne.s32.totalorder %s106, %s107
    %p121 = scmp.eq.s32.totalorder %s15, 1
    %p122 = por %p120, %p121
    %p124 = scmp.ne.s32.totalorder %s107, %s123
    %p125 = scmp.eq.s32.totalorder %s15, 0
    %p126 = por %p124, %p125
    %p127 = scmp.le.s32.totalorder 1, %s9
    %p128 = scmp.lt.s32.totalorder %s9, 3
    %p129 = pnand %p127, %p128
    %p130 = pneg %p129
    // Predicated region
    $region9: #{attention_memory_bank.1} parent=5 // pred_check
      _
    $region10: #{attention_memory_bank.1} parent=5 // pred_check_branch
      %132 = sbr.rel (%p129) target = $region12
    $region11: #{attention_memory_bank.1} parent=5 // pred_region
      %s133 = ssub.s32 %s9, 1
      // Predicated region
      $region13: #{attention_memory_bank.1} parent=11 // pred_check
        %p134 = pneg %p70
      $region14: #{attention_memory_bank.1} parent=11 // pred_check_branch
        %136 = sbr.rel (%p134) target = $region16
      $region15: #{attention_memory_bank.1} parent=11 // pred_region
        _
      $region16: #{attention_memory_bank.1} parent=11 // pred_fallthru
        _
      // Predicated region
      $region17: #{attention_memory_bank.1} parent=11 // pred_check
        %p137 = pneg %p91
      $region18: #{attention_memory_bank.1} parent=11 // pred_check_branch
        %139 = sbr.rel (%p137) target = $region20
      $region19: #{attention_memory_bank.1} parent=11 // pred_region
        _
      $region20: #{attention_memory_bank.1} parent=11 // pred_fallthru
        _
    $region12: #{attention_memory_bank.1} parent=5 // pred_fallthru
      _
    %p140 = scmp.lt.s32.totalorder %s9, 2
    // Predicated region
    $region21: #{attention_memory_bank.1} parent=5 // pred_check
      %p141 = pneg %p140
    $region22: #{attention_memory_bank.1} parent=5 // pred_check_branch
      %143 = sbr.rel (%p141) target = $region24
    $region23: #{attention_memory_bank.1} parent=5 // pred_region
      // Predicated region
      $region25: #{attention_memory_bank.1} parent=23 // pred_check
        %p144 = pneg %p43
      $region26: #{attention_memory_bank.1} parent=23 // pred_check_branch
        %146 = sbr.rel (%p144) target = $region28
      $region27: #{attention_memory_bank.1} parent=23 // pred_region
        %s147 = smul.u32 8, %s17
        %p148 = scmp.lt.s32.totalorder %s16, 1
        %s149 = scalar_select %p148, %s16, 1
        %p150 = scmp.lt.s32.totalorder %s147, 7
        %s151 = scalar_select %p150, %s147, 7
        %s152 = smul.addr %s149, 8
        %s153 = sadd.s32 %s151, %s152
        %s154 = smul.addr %s153, 8
        %s155 = scalar_lea.vmem %s0, %s154
        %s156 = smul.u32 8, %s17
      $region28: #{attention_memory_bank.1} parent=23 // pred_fallthru
        _
    $region24: #{attention_memory_bank.1} parent=5 // pred_fallthru
      _
    %p157 = scmp.le.s32.totalorder 1, %s9
    %p158 = scmp.lt.s32.totalorder %s9, 3
    %p159 = pnand %p157, %p158
    %p160 = pneg %p159
    // Predicated region
    $region29: #{attention_memory_bank.1} parent=5 // pred_check
      _
    $region30: #{attention_memory_bank.1} parent=5 // pred_check_branch
      %162 = sbr.rel (%p159) target = $region32
    $region31: #{attention_memory_bank.1} parent=5 // pred_region
      %s163 = ssub.s32 %s9, 1
      %s164 = smul.u32 8, %s19
      %p165 = scmp.lt.s32.totalorder %s18, 1
      %s166 = scalar_select %p165, %s18, 1
      %p167 = scmp.lt.s32.totalorder %s164, 7
      %s168 = scalar_select %p167, %s164, 7
      %s169 = smul.addr %s166, 8
      %s170 = sadd.s32 %s168, %s169
      %s171 = smul.addr %s170, 8
      %s172 = scalar_lea.vmem %s0, %s171
      %p173 = pneg %p49
      %p174 = pneg %p46
      %p175 = pneg %p70
      %p176 = pneg %p67
      %p177 = pneg %p91
      %p178 = pneg %p88
      %p179 = pneg %p119
      %p180 = pneg %p116
      %s181 = smul.u32 8, %s19
      %p182 = scmp.lt.s32.totalorder %s18, 1
      %s183 = scalar_select %p182, %s18, 1
      %p184 = scmp.lt.s32.totalorder %s181, 7
      %s185 = scalar_select %p184, %s181, 7
      %s186 = smul.addr %s183, 8
      %s187 = sadd.s32 %s185, %s186
      %s188 = smul.addr %s187, 8
      %s189 = scalar_lea.vmem %s3, %s188
      %s190 = smul.u32 8, %s19
      %p191 = scmp.lt.s32.totalorder %s18, 1
      %s192 = scalar_select %p191, %s18, 1
      %p193 = scmp.lt.s32.totalorder %s190, 7
      %s194 = scalar_select %p193, %s190, 7
      %s195 = smul.addr %s192, 8
      %s196 = sadd.s32 %s194, %s195
      %s197 = smul.addr %s196, 8
      %s198 = scalar_lea.vmem %s0, %s197
      %s199 = smul.u32 8, %s19
      %s200 = smul.u32 8, %s19
      %p201 = scmp.lt.s32.totalorder %s18, 1
      %s202 = scalar_select %p201, %s18, 1
      %p203 = scmp.lt.s32.totalorder %s200, 7
      %s204 = scalar_select %p203, %s200, 7
      %s205 = smul.addr %s202, 8
      %s206 = sadd.s32 %s204, %s205
      %s207 = smul.addr %s206, 8
      %s208 = scalar_lea.vmem %s3, %s207
      %s209 = smul.u32 8, %s19
      %v211 = vld [vmem:[%s198] sm:$0xff]
      %v212 = vld [vmem:[%s198 + $0x8] sm:$0xff]
      %v213 = vld [vmem:[%s198 + $0x10] sm:$0xff]
      %v214 = vld [vmem:[%s198 + $0x18] sm:$0xff]
      %v215 = vld [vmem:[%s198 + $0x20] sm:$0xff]
      %v216 = vld [vmem:[%s198 + $0x28] sm:$0xff]
      %v217 = vld [vmem:[%s198 + $0x30] sm:$0xff]
      %v218 = vld [vmem:[%s198 + $0x38] sm:$0xff]
      %v219 = vpack.c.bf16 %v212, %v211
      %v220 = vpack.c.bf16 %v214, %v213
      %v221 = vpack.c.bf16 %v216, %v215
      %v222 = vpack.c.bf16 %v218, %v217
      %v223 = vld [vmem:[%s1] sm:$0xf]
      %v224 = vld [vmem:[%s1 + $0x4] sm:$0xf]
      %v225 = vld [vmem:[%s1 + $0x8] sm:$0xf]
      %v226 = vld [vmem:[%s1 + $0xc] sm:$0xf]
      %v231 = vunpack.c.l.b16 %v223
      %v232 = vunpack.c.l.b16 %v224
      %v233 = vunpack.c.l.b16 %v225
      %v234 = vunpack.c.l.b16 %v226
      %v235 = vpack.c.b16 %v232, %v231
      %v236 = vpack.c.b16 %v234, %v233
      %vm239 = vcmask 261120
      %v241 = vsel %vm239, %v219, 0
      %v244 = vsel %vm239, %v220, 0
      %v247 = vsel %vm239, %v221, 0
      %v250 = vsel %vm239, %v222, 0
      %252 = vmatpush.bf16.msra.mxu0 0
      %253 = vmatpush.bf16.msra.mxu0 0
      %254 = vmatpush.bf16.msra.mxu0 0
      %255 = vmatpush.bf16.msra.mxu0 0
      %256 = vmatpush.bf16.msra.mxu0 0
      %257 = vmatpush.bf16.msra.mxu0 0
      %258 = vmatpush.bf16.msra.mxu0 %v236
      %259 = vmatpush.bf16.msra.mxu0 %v235
      %260 = vmatmul.bf16.gmra.mxu0 %v241
      %v261 = vpop.f32.mrf.mxu0
      %v262 = vadd.f32 0.0, %v261
      %v263 = vpop.f32.mrf.mxu0
      %v264 = vadd.f32 0.0, %v263
      %265 = vmatmul.bf16.gmra.mxu0 %v244
      %v266 = vpop.f32.mrf.mxu0
      %v267 = vadd.f32 0.0, %v266
      %v268 = vpop.f32.mrf.mxu0
      %v269 = vadd.f32 0.0, %v268
      %270 = vmatmul.bf16.gmra.mxu0 %v247
      %v271 = vpop.f32.mrf.mxu0
      %v272 = vadd.f32 0.0, %v271
      %v273 = vpop.f32.mrf.mxu0
      %v274 = vadd.f32 0.0, %v273
      %275 = vmatmul.bf16.gmra.mxu0 %v250
      %v276 = vpop.f32.mrf.mxu0
      %v277 = vadd.f32 0.0, %v276
      %v278 = vpop.f32.mrf.mxu0
      %v279 = vadd.f32 0.0, %v278
      %280 = vdwg.mxu0
      %vm281 = vcmask 523264
      %v282 = vsel %vm281, %v262, -inf
      %283 = vmax.xlane.f32.xlu0 %v282
      %v284 = vpop.xlane.xlu0 %283
      %v285 = vsel %vm281, %v264, -inf
      %286 = vmax.xlane.f32.xlu0 %v285
      %v287 = vpop.xlane.xlu0 %286
      %v288 = vsel %vm281, %v267, -inf
      %289 = vmax.xlane.f32.xlu0 %v288
      %v290 = vpop.xlane.xlu0 %289
      %v291 = vsel %vm281, %v269, -inf
      %292 = vmax.xlane.f32.xlu0 %v291
      %v293 = vpop.xlane.xlu0 %292
      %v294 = vsel %vm281, %v272, -inf
      %295 = vmax.xlane.f32.xlu0 %v294
      %v296 = vpop.xlane.xlu0 %295
      %v297 = vsel %vm281, %v274, -inf
      %298 = vmax.xlane.f32.xlu0 %v297
      %v299 = vpop.xlane.xlu0 %298
      %v300 = vsel %vm281, %v277, -inf
      %301 = vmax.xlane.f32.xlu0 %v300
      %v302 = vpop.xlane.xlu0 %301
      %v303 = vsel %vm281, %v279, -inf
      %304 = vmax.xlane.f32.xlu0 %v303
      %v305 = vpop.xlane.xlu0 %304
      %v306 = vsub.f32 %v262, %v284
      %v307 = vsub.f32 %v264, %v287
      %v308 = vsub.f32 %v267, %v290
      %v309 = vsub.f32 %v269, %v293
      %v310 = vsub.f32 %v272, %v296
      %v311 = vsub.f32 %v274, %v299
      %v312 = vsub.f32 %v277, %v302
      %v313 = vsub.f32 %v279, %v305
      %v314 = vmul.f32 %v306, 1.442695
      %v315 = vpow.pop %v314
      %v316 = vmul.f32 %v307, 1.442695
      %v317 = vpow.pop %v316
      %v318 = vmul.f32 %v308, 1.442695
      %v319 = vpow.pop %v318
      %v320 = vmul.f32 %v309, 1.442695
      %v321 = vpow.pop %v320
      %v322 = vmul.f32 %v310, 1.442695
      %v323 = vpow.pop %v322
      %v324 = vmul.f32 %v311, 1.442695
      %v325 = vpow.pop %v324
      %v326 = vmul.f32 %v312, 1.442695
      %v327 = vpow.pop %v326
      %v328 = vmul.f32 %v313, 1.442695
      %v329 = vpow.pop %v328
      %v330 = vsel %vm281, %v315, 0.0
      %331 = vadd.xlane.f32.xlu0 %v330
      %v332 = vpop.xlane.xlu0 %331
      %v333 = vsel %vm281, %v317, 0.0
      %334 = vadd.xlane.f32.xlu0 %v333
      %v335 = vpop.xlane.xlu0 %334
      %v336 = vsel %vm281, %v319, 0.0
      %337 = vadd.xlane.f32.xlu0 %v336
      %v338 = vpop.xlane.xlu0 %337
      %v339 = vsel %vm281, %v321, 0.0
      %340 = vadd.xlane.f32.xlu0 %v339
      %v341 = vpop.xlane.xlu0 %340
      %v342 = vsel %vm281, %v323, 0.0
      %343 = vadd.xlane.f32.xlu0 %v342
      %v344 = vpop.xlane.xlu0 %343
      %v345 = vsel %vm281, %v325, 0.0
      %346 = vadd.xlane.f32.xlu0 %v345
      %v347 = vpop.xlane.xlu0 %346
      %v348 = vsel %vm281, %v327, 0.0
      %349 = vadd.xlane.f32.xlu0 %v348
      %v350 = vpop.xlane.xlu0 %349
      %v351 = vsel %vm281, %v329, 0.0
      %352 = vadd.xlane.f32.xlu0 %v351
      %v353 = vpop.xlane.xlu0 %352
      %v354 = vpack.c.bf16 %v317, %v315
      %v355 = vpack.c.bf16 %v321, %v319
      %v356 = vpack.c.bf16 %v325, %v323
      %v357 = vpack.c.bf16 %v329, %v327
      %v358 = vld [vmem:[%s2] sm:$0xf]
      %v359 = vld [vmem:[%s2 + $0x4] sm:$0xf]
      %v360 = vld [vmem:[%s2 + $0x8] sm:$0xf]
      %v361 = vld [vmem:[%s2 + $0xc] sm:$0xf]
      %v362 = vld [vmem:[%s2 + $0x10] sm:$0xf]
      %v363 = vld [vmem:[%s2 + $0x14] sm:$0xf]
      %v364 = vld [vmem:[%s2 + $0x18] sm:$0xf]
      %v365 = vld [vmem:[%s2 + $0x1c] sm:$0xf]
      %v374 = vunpack.c.l.b16 %v358
      %v375 = vunpack.c.l.b16 %v359
      %v376 = vunpack.c.l.b16 %v360
      %v377 = vunpack.c.l.b16 %v361
      %v378 = vunpack.c.l.b16 %v362
      %v379 = vunpack.c.l.b16 %v363
      %v380 = vunpack.c.l.b16 %v364
      %v381 = vunpack.c.l.b16 %v365
      %v382 = vpack.c.b16 %v375, %v374
      %v383 = vpack.c.b16 %v377, %v376
      %v384 = vpack.c.b16 %v379, %v378
      %v385 = vpack.c.b16 %v381, %v380
      %v391 = vsel %vm281, %v354, 0
      %v394 = vsel %vm281, %v355, 0
      %v397 = vsel %vm281, %v356, 0
      %v400 = vsel %vm281, %v357, 0
      %402 = vmatpush.bf16.msra.mxu0 0
      %403 = vmatpush.bf16.msra.mxu0 0
      %404 = vmatpush.bf16.msra.mxu0 0
      %405 = vmatpush.bf16.msra.mxu0 0
      %406 = vmatpush.bf16.msra.mxu0 %v385
      %407 = vmatpush.bf16.msra.mxu0 %v384
      %408 = vmatpush.bf16.msra.mxu0 %v383
      %409 = vmatpush.bf16.msra.mxu0 %v382
      %410 = vmatmul.bf16.gmra.mxu0 %v391
      %v411 = vpop.f32.mrf.mxu0
      %v412 = vadd.f32 0.0, %v411
      %v413 = vpop.f32.mrf.mxu0
      %v414 = vadd.f32 0.0, %v413
      %415 = vmatmul.bf16.gmra.mxu0 %v394
      %v416 = vpop.f32.mrf.mxu0
      %v417 = vadd.f32 0.0, %v416
      %v418 = vpop.f32.mrf.mxu0
      %v419 = vadd.f32 0.0, %v418
      %420 = vmatmul.bf16.gmra.mxu0 %v397
      %v421 = vpop.f32.mrf.mxu0
      %v422 = vadd.f32 0.0, %v421
      %v423 = vpop.f32.mrf.mxu0
      %v424 = vadd.f32 0.0, %v423
      %425 = vmatmul.bf16.gmra.mxu0 %v400
      %v426 = vpop.f32.mrf.mxu0
      %v427 = vadd.f32 0.0, %v426
      %v428 = vpop.f32.mrf.mxu0
      %v429 = vadd.f32 0.0, %v428
      %430 = vdwg.mxu0
      %v431 = vrcp.pop %v332
      %v432 = vrcp.pop %v335
      %v433 = vrcp.pop %v338
      %v434 = vrcp.pop %v341
      %v435 = vrcp.pop %v344
      %v436 = vrcp.pop %v347
      %v437 = vrcp.pop %v350
      %v438 = vrcp.pop %v353
      %v439 = vmul.f32 %v412, %v431
      %v440 = vmul.f32 %v414, %v432
      %v441 = vmul.f32 %v417, %v433
      %v442 = vmul.f32 %v419, %v434
      %v443 = vmul.f32 %v422, %v435
      %v444 = vmul.f32 %v424, %v436
      %v445 = vmul.f32 %v427, %v437
      %v446 = vmul.f32 %v429, %v438
      %447 = vst.msk [vmem:[%s208] sm:$0xff] %vm239, %v439
      %448 = vst.msk [vmem:[%s208 + $0x8] sm:$0xff] %vm239, %v440
      %449 = vst.msk [vmem:[%s208 + $0x10] sm:$0xff] %vm239, %v441
      %450 = vst.msk [vmem:[%s208 + $0x18] sm:$0xff] %vm239, %v442
      %451 = vst.msk [vmem:[%s208 + $0x20] sm:$0xff] %vm239, %v443
      %452 = vst.msk [vmem:[%s208 + $0x28] sm:$0xff] %vm239, %v444
      %453 = vst.msk [vmem:[%s208 + $0x30] sm:$0xff] %vm239, %v445
      %454 = vst.msk [vmem:[%s208 + $0x38] sm:$0xff] %vm239, %v446
      %s455 = smul.u32 8, %s19
      %p456 = scmp.lt.s32.totalorder %s18, 1
      %s457 = scalar_select %p456, %s18, 1
      %p458 = scmp.lt.s32.totalorder %s455, 7
      %s459 = scalar_select %p458, %s455, 7
      %s460 = smul.addr %s457, 8
      %s461 = sadd.s32 %s459, %s460
      %s462 = smul.addr %s461, 8
      %s463 = scalar_lea.vmem %s3, %s462
      // Predicated region
      $region33: #{attention_memory_bank.1} parent=31 // pred_check
        %p464 = pneg %p116
      $region34: #{attention_memory_bank.1} parent=31 // pred_check_branch
        %466 = sbr.rel (%p464) target = $region36
      $region35: #{attention_memory_bank.1} parent=31 // pred_region
        %s467 = smul.u32 8, %s19
      $region36: #{attention_memory_bank.1} parent=31 // pred_fallthru
        _
    $region32: #{attention_memory_bank.1} parent=5 // pred_fallthru
      _
    %p468 = scmp.le.s32.totalorder 2, %s9
    // Predicated region
    $region37: #{attention_memory_bank.1} parent=5 // pred_check
      %p469 = pneg %p468
    $region38: #{attention_memory_bank.1} parent=5 // pred_check_branch
      %471 = sbr.rel (%p469) target = $region40
    $region39: #{attention_memory_bank.1} parent=5 // pred_region
      %s472 = ssub.s32 %s9, 2
      // Predicated region
      $region41: #{attention_memory_bank.1} parent=39 // pred_check
        %p473 = pneg %p122
      $region42: #{attention_memory_bank.1} parent=39 // pred_check_branch
        %475 = sbr.rel (%p473) target = $region44
      $region43: #{attention_memory_bank.1} parent=39 // pred_region
        %s476 = smul.u32 8, %s21
        %p477 = scmp.lt.s32.totalorder %s20, 1
        %s478 = scalar_select %p477, %s20, 1
        %p479 = scmp.lt.s32.totalorder %s476, 7
        %s480 = scalar_select %p479, %s476, 7
        %s481 = smul.addr %s478, 8
        %s482 = sadd.s32 %s480, %s481
        %s483 = smul.addr %s482, 8
        %s484 = scalar_lea.vmem %s3, %s483
      $region44: #{attention_memory_bank.1} parent=39 // pred_fallthru
        _
    $region40: #{attention_memory_bank.1} parent=5 // pred_fallthru
      _
  $region6: #{attention_memory_bank.1} parent=0 // loop_footer
    %s13 = sadd.s32 1, %s9
  $region7: #{attention_memory_bank.1} parent=0 // loop_footer_branch
    %8 = sbr.rel target = $region3
  $region8: #{attention_memory_bank.1} parent=0 // loop_exit
    _

</llo_original>
